<compile_context>
chip_gen: v7x
topology: tpu7x:2x2x1
jax: 0.10.0
libtpu: 0.0.40
codegen_flags: <defaults>
</compile_context>

<pallas_src>
import functools

import numpy as np
import jax
import jax.numpy as jnp
from jax import lax
from jax.experimental import pallas as pl
from jax.experimental.pallas import tpu as pltpu

EPSILON = float(np.finfo(np.float32).tiny)  # matches torch.finfo(torch.float32).tiny
NEG_INF = -1e30
LANE = 128
SUBLANE = 8
BLOCK_BYTES = 4 * 1024 * 1024  # per-block budget; double-buffered in+out fits v7x VMEM


def _round_up(x, m):
    return ((x + m - 1) // m) * m


# ----------------------------- Pallas kernel -------------------------------
def continuous_topk_kernel(att_g_ref, khot_ref, *, k, inv_temperature, eps, prob_space):
    """continuous_topk (separate=False) on one (n_pad, TILE_R) block.

    Nodes (softmax axis) live on sublanes, independent (sample, graph) rows on
    lanes.  Padded node rows carry -1e30 (baked in host-side) so they take no
    softmax mass and their penalty stays log(1) = 0.
    """
    att_g = att_g_ref[...]

    if prob_space:
        # temperature == 1: after the first softmax, the log-penalty + re-exp
        # collapses to the algebraically identical probability-space update
        #   p_{r+1} = normalize(p_r * max(1 - p_r, eps))
        # -> one exp total instead of (exp + log) per element per round.
        logits = att_g * inv_temperature
        m = jnp.max(logits, axis=0, keepdims=True)
        e = jnp.exp(logits - m)
        p = e * (1.0 / jnp.sum(e, axis=0, keepdims=True))
        khot = p
        if k > 1:
            def body(_, carry):
                p, khot = carry
                e = p * jnp.maximum(1.0 - p, eps)
                p = e * (1.0 / jnp.sum(e, axis=0, keepdims=True))
                return p, khot + p

            p, khot = lax.fori_loop(1, k, body, (p, khot), unroll=True)
    else:
        # General-temperature log-space path (matches the reference verbatim:
        # penalty applied before softmax, first penalty is log(1) = 0).
        def body(_, carry):
            att_g, khot = carry
            logits = att_g * inv_temperature
            m = jnp.max(logits, axis=0, keepdims=True)
            e = jnp.exp(logits - m)
            onehot = e * (1.0 / jnp.sum(e, axis=0, keepdims=True))
            att_g = att_g + jnp.log(jnp.maximum(1.0 - onehot, eps))
            return att_g, khot + onehot

        _, khot = lax.fori_loop(0, k, body, (att_g, jnp.zeros_like(att_g)),
                                unroll=True)

    khot_ref[...] = khot.astype(khot_ref.dtype)


def sample_khot(att_g_slab, k, temperature):
    """Relaxed top-k for all (sample, graph) columns.

    att_g_slab: (N, R) float32 gumbel-perturbed attention (nodes x rows).
    Returns (N, R) float32 khot scores in the same (slab) orientation.
    """
    N, R = att_g_slab.shape
    n_pad = _round_up(N, SUBLANE)

    # Lane tile sized by bytes, not a lane cap: grow until the per-block byte
    # budget binds, then split once so the "parallel" row axis has >= 2 grid
    # steps (lets megacore / v7x dual-TC shard rows) when R is large enough.
    tile_budget = max(LANE, (BLOCK_BYTES // (4 * n_pad)) // LANE * LANE)
    tile_r = min(_round_up(R, LANE), tile_budget)
    if _round_up(R, tile_r) // tile_r == 1 and tile_r > LANE:
        tile_r = max(LANE, (tile_r // 2) // LANE * LANE)
    r_pad = _round_up(R, tile_r)

    # Padded slab with the sublane mask baked in (-1e30 in padded node rows):
    # exp of ~-1e30 is 0 and its penalty stays log(1)=0, so no in-kernel mask.
    slab = jnp.full((n_pad, r_pad), NEG_INF, jnp.float32)
    slab = slab.at[:N, :R].set(att_g_slab.astype(jnp.float32))

    kernel = functools.partial(
        continuous_topk_kernel,
        k=int(k),
        inv_temperature=1.0 / float(temperature),
        eps=EPSILON,
        prob_space=(float(temperature) == 1.0),
    )

    out = pl.pallas_call(
        kernel,
        out_shape=jax.ShapeDtypeStruct((n_pad, r_pad), jnp.float32),
        grid=(r_pad // tile_r,),
        in_specs=[pl.BlockSpec((n_pad, tile_r), lambda i: (0, i))],
        out_specs=pl.BlockSpec((n_pad, tile_r), lambda i: (0, i)),
        compiler_params=pltpu.CompilerParams(
            dimension_semantics=("parallel",),
            vmem_limit_bytes=32 * 1024 * 1024,  # covers v5e's 16 MiB scoped default
        ),
    )(slab)

    return out[:N, :R]


# -------------------- fused device pipeline (one jit) -----------------------
@functools.partial(
    jax.jit,
    static_argnames=("num_graphs", "nodes_per_graph", "k", "gnum_m", "temperature"),
)
def _sample_pipeline(att, x_feature, offsets, key, *, num_graphs, nodes_per_graph,
                     k, gnum_m, temperature):
    """Slab build + gumbel keys + Pallas khot + top-k selection + gathers,
    all fused under one jit so no extra HBM passes surround the kernel and no
    host seed sync is needed."""
    N = nodes_per_graph
    R = gnum_m * num_graphs
    m_dim = att.shape[1]

    # Slab orientation: slab[n, j*num_graphs + i] = att[i*N + n, j].
    att_slab = att.astype(jnp.float32).reshape(num_graphs, N, m_dim)
    att_slab = att_slab.transpose(1, 2, 0).reshape(N, R)

    # gumbel_keys: att_g = att + (-log(-log(uniform + EPS))), device-side noise.
    # NOTE: different random stream than torch.rand_like, identical distribution.
    u = jax.random.uniform(key, (N, R), dtype=jnp.float32)
    att_g = att_slab + (-jnp.log(-jnp.log(u + EPSILON)))

    khot = sample_khot(att_g, k, temperature)                      # (N, R)

    # torch.argsort (ascending): last k -> kept nodes, first N-k -> counter set.
    # Argsort runs in slab orientation (axis 0); only the tiny index arrays
    # get transposed afterwards.
    order = jnp.argsort(khot, axis=0).astype(jnp.int32)            # (N, R)
    top_local = jnp.sort(order[N - k:, :], axis=0)                 # (k, R)
    counter_local = jnp.sort(order[:N - k, :], axis=0)             # (N-k, R)

    top_local = top_local.T.reshape(gnum_m, num_graphs, k)
    counter_local = counter_local.T.reshape(gnum_m, num_graphs, N - k)
    off = offsets.astype(jnp.int32)[None, :, None]
    top_global = (top_local + off).reshape(gnum_m, num_graphs * k)
    counter_global = (counter_local + off).reshape(gnum_m, num_graphs * (N - k))

    flat_top = top_global.reshape(-1)
    sub_x = jnp.take(x_feature, flat_top, axis=0).reshape(
        gnum_m, num_graphs * k, x_feature.shape[1])
    sub_att = jnp.take(att, flat_top, axis=0).reshape(
        gnum_m, num_graphs * k, att.shape[1])
    return top_global, counter_global, sub_x, sub_att


# ----------------------------- Python glue ---------------------------------
def reconstruct(data, top_k_idxs):
    """JAX/numpy port of Sampler.reconstruct (host-side graph re-indexing)."""
    top_k_idxs = [int(t) for t in top_k_idxs]
    x = np.asarray(data["x"])[top_k_idxs, :]
    edge_index = np.asarray(data["edge_index"])
    edge_attr = np.asarray(data["edge_attr"])
    batch = np.asarray(data["batch"])[top_k_idxs]

    top_set = set(top_k_idxs)
    edge_sel = [
        idx
        for idx, (src, dst) in enumerate(edge_index.T)
        if int(src) in top_set and int(dst) in top_set
    ]
    edge_attr = edge_attr[edge_sel]
    edge_index = edge_index[:, edge_sel]

    srt = sorted(top_k_idxs)
    redict = {node_id: i for i, node_id in enumerate(srt)}
    if edge_index.shape[1] > 0:
        edges_list = [[redict[int(s)], redict[int(d)]] for s, d in edge_index.T]
        edge_index = np.asarray(edges_list, dtype=np.int64).T
    else:
        edge_index = np.zeros((2, 0), dtype=np.int64)
    return {"x": x, "edge_index": edge_index, "edge_attr": edge_attr, "batch": batch}


class Sampler:
    def __init__(self, sampler_config, batch_size):
        self.Nnum_k = float(sampler_config["Nnum_k"])
        self.Gnum_m = int(sampler_config["Gnum_m"])
        self.temperature = float(sampler_config["temperature"])
        self.separate = sampler_config["separate"]
        self.batch_size = batch_size
        # TODO(synk): separate=True path (per-step khot_list output) not implemented;
        # this script uses separate=False, which is what forward's argsort expects.

    def forward(self, data, ori_embs, att, X_feature, rng):
        batch = np.asarray(data["batch"])
        num_graphs = int(batch.max()) + 1
        nodes_num = np.bincount(batch, minlength=num_graphs)
        self.nodes_num = np.concatenate([[0], np.cumsum(nodes_num)])
        self.subNnum_k = [int(np.ceil(d * self.Nnum_k)) for d in nodes_num]
        self.ori_embs = ori_embs
        self.att = att
        self.X_feature = X_feature

        # Synthetic setup: uniform graph sizes so the kernel slab is rectangular.
        assert len(set(nodes_num.tolist())) == 1, "uniform graph sizes required"
        N = int(nodes_num[0])
        k = int(self.subNnum_k[0])
        offsets = jnp.asarray(self.nodes_num[:-1], jnp.int32)

        top_global, counter_global, sub_X, sub_att = _sample_pipeline(
            att, X_feature, offsets, rng,
            num_graphs=num_graphs, nodes_per_graph=N, k=k,
            gnum_m=self.Gnum_m, temperature=self.temperature)

        # Single small D2H of the index lists for host-side graph re-indexing.
        top_np = np.asarray(jax.device_get(top_global))
        counter_np = np.asarray(jax.device_get(counter_global))

        sub_graphs = [0] * self.Gnum_m
        counter_sub_graphs_idxs = []
        sub_X_features = []
        sub_atts = []
        self.all_top_ks = []
        for j in range(self.Gnum_m):
            idxs = top_np[j].tolist()
            self.all_top_ks.append(idxs)
            sub_graphs[j] = reconstruct(data, idxs)
            counter_sub_graphs_idxs.append(counter_np[j].tolist())
            sub_X_features.append(sub_X[j])
            sub_atts.append(sub_att[j])

        return sub_graphs, sub_atts, counter_sub_graphs_idxs, sub_X_features


# --------------------------------- main -------------------------------------
if __name__ == "__main__":
    key = jax.random.PRNGKey(0)
    k_att, k_x, k_feat, k_emb, k_noise = jax.random.split(key, 5)

    num_graphs = 2
    nodes_per_graph = 8
    num_nodes = num_graphs * nodes_per_graph
    node_feat_dim = 5
    hidden = 32
    Gnum_m = 3

    sampler_config = {
        "Nnum_k": 0.5,          # keep ceil(0.5 * 8) = 4 nodes per graph
        "Gnum_m": Gnum_m,
        "temperature": 1.0,
        "separate": False,
    }

    # Deterministic synthetic graph batch (ring graph per sub-graph).
    batch = np.repeat(np.arange(num_graphs), nodes_per_graph)
    edges = []
    for g in range(num_graphs):
        off = g * nodes_per_graph
        for i in range(nodes_per_graph):
            edges.append([off + i, off + (i + 1) % nodes_per_graph])
    edge_index = np.asarray(edges, dtype=np.int64).T            # (2, E)
    edge_attr = np.arange(edge_index.shape[1] * 2, dtype=np.float32).reshape(-1, 2)

    data = {
        "x": np.asarray(jax.random.normal(k_x, (num_nodes, node_feat_dim), jnp.float32)),
        "edge_index": edge_index,
        "edge_attr": edge_attr,
        "batch": batch,
    }
    att = jax.random.normal(k_att, (num_nodes, Gnum_m), dtype=jnp.float32)
    X_feature = jax.random.normal(k_feat, (num_nodes, hidden), dtype=jnp.float32)
    ori_embs = jax.random.normal(k_emb, (num_nodes, hidden), dtype=jnp.float32)

    sampler = Sampler(sampler_config, batch_size=num_graphs)
    sub_graphs, sub_atts, counter_idxs, sub_X_feature = sampler.forward(
        data, ori_embs, att, X_feature, k_noise
    )

    for arr in list(sub_X_feature) + list(sub_atts):
        jax.block_until_ready(arr)

    # light sanity checks
    assert len(sub_graphs) == Gnum_m and len(sub_X_feature) == Gnum_m
    assert sub_X_feature[0].shape == (num_graphs * 4, hidden)
    assert sub_atts[0].shape == (num_graphs * 4, Gnum_m)
    # selected indices are unique per subgraph sample; counter lists complete
    for j in range(Gnum_m):
        assert len(set(sampler.all_top_ks[j])) == num_graphs * 4
    assert all(len(c) == num_graphs * 4 for c in counter_idxs)

    print("KERNEL_OK")
</pallas_src>

<mosaic_0001>
module attributes {stable_mosaic.version = 11 : i64} {
  func.func @continuous_topk_kernel(%arg0: i32, %arg1: memref<8x128xf32, #tpu.memory_space<vmem>>, %arg2: memref<8x128xf32, #tpu.memory_space<vmem>>) attributes {dimension_semantics = [#tpu.dimension_semantics<parallel>], iteration_bounds = array<i64: 1>, scalar_prefetch = 0 : i64, scratch_operands = 0 : i64, tpu.core_type = #tpu.core_type<tc>, window_params = [{transform_indices = @transform_0, window_bounds = array<i64: 8, 128>}, {transform_indices = @transform_1, window_bounds = array<i64: 8, 128>}]} {
    %c0 = arith.constant 0 : index
    %c0_0 = arith.constant 0 : index
    %0 = vector.load %arg1[%c0, %c0_0] : memref<8x128xf32, #tpu.memory_space<vmem>>, vector<8x128xf32>
    %cst = arith.constant 1.000000e+00 : f32
    %1 = vector.broadcast %cst : f32 to vector<8x128xf32>
    %2 = arith.mulf %0, %1 : vector<8x128xf32>
    %cst_1 = arith.constant dense<0xFF800000> : vector<128xf32>
    %3 = vector.multi_reduction <maximumf>, %2, %cst_1 [0] : vector<8x128xf32> to vector<128xf32>
    %4 = vector.shape_cast %3 : vector<128xf32> to vector<1x128xf32>
    %5 = vector.broadcast %4 : vector<1x128xf32> to vector<8x128xf32>
    %6 = arith.subf %2, %5 : vector<8x128xf32>
    %7 = math.exp %6 : vector<8x128xf32>
    %cst_2 = arith.constant dense<0.000000e+00> : vector<128xf32>
    %8 = vector.multi_reduction <add>, %7, %cst_2 [0] : vector<8x128xf32> to vector<128xf32>
    %9 = vector.shape_cast %8 : vector<128xf32> to vector<1x128xf32>
    %cst_3 = arith.constant 1.000000e+00 : f32
    %10 = vector.broadcast %cst_3 : f32 to vector<1x128xf32>
    %11 = arith.divf %10, %9 : vector<1x128xf32>
    %12 = vector.broadcast %11 : vector<1x128xf32> to vector<8x128xf32>
    %13 = arith.mulf %7, %12 : vector<8x128xf32>
    %c0_i32 = arith.constant 0 : i32
    %cst_4 = arith.constant 1.000000e+00 : f32
    %14 = vector.broadcast %cst_4 : f32 to vector<8x128xf32>
    %15 = arith.subf %14, %13 : vector<8x128xf32>
    %cst_5 = arith.constant 1.17549435E-38 : f32
    %16 = vector.broadcast %cst_5 : f32 to vector<8x128xf32>
    %17 = arith.maximumf %15, %16 : vector<8x128xf32>
    %18 = arith.mulf %13, %17 : vector<8x128xf32>
    %cst_6 = arith.constant dense<0.000000e+00> : vector<128xf32>
    %19 = vector.multi_reduction <add>, %18, %cst_6 [0] : vector<8x128xf32> to vector<128xf32>
    %20 = vector.shape_cast %19 : vector<128xf32> to vector<1x128xf32>
    %cst_7 = arith.constant 1.000000e+00 : f32
    %21 = vector.broadcast %cst_7 : f32 to vector<1x128xf32>
    %22 = arith.divf %21, %20 : vector<1x128xf32>
    %23 = vector.broadcast %22 : vector<1x128xf32> to vector<8x128xf32>
    %24 = arith.mulf %18, %23 : vector<8x128xf32>
    %25 = arith.addf %13, %24 : vector<8x128xf32>
    %c1_i32 = arith.constant 1 : i32
    %cst_8 = arith.constant 1.000000e+00 : f32
    %26 = vector.broadcast %cst_8 : f32 to vector<8x128xf32>
    %27 = arith.subf %26, %24 : vector<8x128xf32>
    %cst_9 = arith.constant 1.17549435E-38 : f32
    %28 = vector.broadcast %cst_9 : f32 to vector<8x128xf32>
    %29 = arith.maximumf %27, %28 : vector<8x128xf32>
    %30 = arith.mulf %24, %29 : vector<8x128xf32>
    %cst_10 = arith.constant dense<0.000000e+00> : vector<128xf32>
    %31 = vector.multi_reduction <add>, %30, %cst_10 [0] : vector<8x128xf32> to vector<128xf32>
    %32 = vector.shape_cast %31 : vector<128xf32> to vector<1x128xf32>
    %cst_11 = arith.constant 1.000000e+00 : f32
    %33 = vector.broadcast %cst_11 : f32 to vector<1x128xf32>
    %34 = arith.divf %33, %32 : vector<1x128xf32>
    %35 = vector.broadcast %34 : vector<1x128xf32> to vector<8x128xf32>
    %36 = arith.mulf %30, %35 : vector<8x128xf32>
    %37 = arith.addf %25, %36 : vector<8x128xf32>
    %c2_i32 = arith.constant 2 : i32
    %cst_12 = arith.constant 1.000000e+00 : f32
    %38 = vector.broadcast %cst_12 : f32 to vector<8x128xf32>
    %39 = arith.subf %38, %36 : vector<8x128xf32>
    %cst_13 = arith.constant 1.17549435E-38 : f32
    %40 = vector.broadcast %cst_13 : f32 to vector<8x128xf32>
    %41 = arith.maximumf %39, %40 : vector<8x128xf32>
    %42 = arith.mulf %36, %41 : vector<8x128xf32>
    %cst_14 = arith.constant dense<0.000000e+00> : vector<128xf32>
    %43 = vector.multi_reduction <add>, %42, %cst_14 [0] : vector<8x128xf32> to vector<128xf32>
    %44 = vector.shape_cast %43 : vector<128xf32> to vector<1x128xf32>
    %cst_15 = arith.constant 1.000000e+00 : f32
    %45 = vector.broadcast %cst_15 : f32 to vector<1x128xf32>
    %46 = arith.divf %45, %44 : vector<1x128xf32>
    %47 = vector.broadcast %46 : vector<1x128xf32> to vector<8x128xf32>
    %48 = arith.mulf %42, %47 : vector<8x128xf32>
    %49 = arith.addf %37, %48 : vector<8x128xf32>
    %c0_16 = arith.constant 0 : index
    %c0_17 = arith.constant 0 : index
    %50 = vector.load %arg2[%c0_16, %c0_17] : memref<8x128xf32, #tpu.memory_space<vmem>>, vector<8x128xf32>
    tpu.vector_store %arg2[%c0_16, %c0_17], %49 {strides = array<i32>} : memref<8x128xf32, #tpu.memory_space<vmem>>, vector<8x128xf32>,
    return
  }
  func.func @transform_0(%arg0: i32) -> (i32, i32) {
    %c0_i32 = arith.constant 0 : i32
    %c0_i32_0 = arith.constant 0 : i32
    return %c0_i32, %arg0 : i32, i32
  }
  func.func @transform_1(%arg0: i32) -> (i32, i32) {
    %c0_i32 = arith.constant 0 : i32
    %c0_i32_0 = arith.constant 0 : i32
    return %c0_i32, %arg0 : i32, i32
  }
}

</mosaic_0001>

<llo_original>
// kernel: _sample_pipeline.1
$region0: #{_sample_pipeline.1}
  #allocation0 [shape = 'u32[]', space=smem, size = 0x4, offset = 0x4, fixed_abs, tag = 'smem constant byte address 0x4 - core index']
  #allocation1 [shape = 'u32[144,128]{1,0:T(1,128)}', space=vmem, size = 0x12000, scoped, tag = 'internal scratch']
  %s0 = inlined_call_operand.vmem [shape: f32[8,128], index: 0, kind: input, shape index: {}]
  %s1 = inlined_call_operand.vmem [shape: f32[8,128], index: 1, kind: output, shape index: {}]
  %s2 = sld [smem:[#allocation0]]
  $region14: #{_sample_pipeline.1} parent=0
    _
  %s4 = ssub.s32 1, %s2
  %s5 = scalar_select 0, %s4, %s2
  // Predicated region
  $region2: #{_sample_pipeline.1} parent=0 // pred_check
    _
  $region3: #{_sample_pipeline.1} parent=0 // pred_check_branch
    %7 = sbr.rel (0) target = $region5
  $region4: #{_sample_pipeline.1} parent=0 // pred_region
    _
  $region5: #{_sample_pipeline.1} parent=0 // pred_fallthru
    _
  %v8 = vld [vmem:[%s0] sm:$0xff]
  %v9 = vrot.slane %v8, 4
  %v10 = vmax.f32 %v8, %v9
  %v11 = vrot.slane %v10, 2
  %v12 = vmax.f32 %v10, %v11
  %v13 = vrot.slane %v12, 1
  %v14 = vmax.f32 %v12, %v13
  %v15 = vsub.f32 %v8, %v14
  %v16 = vmul.f32 %v15, 1.442695
  %v17 = vpow.pop %v16
  %v18 = vrot.slane %v17, 4
  %v19 = vadd.f32 %v17, %v18
  %v20 = vrot.slane %v19, 2
  %v21 = vadd.f32 %v19, %v20
  %v22 = vrot.slane %v21, 1
  %v23 = vadd.f32 %v21, %v22
  %v24 = vrcp.pop %v23
  %v25 = vmul.f32 1.0, %v24
  %v26 = vmul.f32 %v17, %v25
  %v27 = vsub.f32 1.0, %v26
  %v28 = vmax.f32 %v27, 1.1754944e-38
  %v29 = vmul.f32 %v26, %v28
  %v30 = vrot.slane %v29, 4
  %v31 = vadd.f32 %v29, %v30
  %v32 = vrot.slane %v31, 2
  %v33 = vadd.f32 %v31, %v32
  %v34 = vrot.slane %v33, 1
  %v35 = vadd.f32 %v33, %v34
  %v36 = vrcp.pop %v35
  %v37 = vmul.f32 1.0, %v36
  %v38 = vmul.f32 %v29, %v37
  %v39 = vadd.f32 %v26, %v38
  %v40 = vsub.f32 1.0, %v38
  %v41 = vmax.f32 %v40, 1.1754944e-38
  %v42 = vmul.f32 %v38, %v41
  %v43 = vrot.slane %v42, 4
  %v44 = vadd.f32 %v42, %v43
  %v45 = vrot.slane %v44, 2
  %v46 = vadd.f32 %v44, %v45
  %v47 = vrot.slane %v46, 1
  %v48 = vadd.f32 %v46, %v47
  %v49 = vrcp.pop %v48
  %v50 = vmul.f32 1.0, %v49
  %v51 = vmul.f32 %v42, %v50
  %v52 = vadd.f32 %v39, %v51
  %v53 = vsub.f32 1.0, %v51
  %v54 = vmax.f32 %v53, 1.1754944e-38
  %v55 = vmul.f32 %v51, %v54
  %v56 = vrot.slane %v55, 4
  %v57 = vadd.f32 %v55, %v56
  %v58 = vrot.slane %v57, 2
  %v59 = vadd.f32 %v57, %v58
  %v60 = vrot.slane %v59, 1
  %v61 = vadd.f32 %v59, %v60
  %v62 = vrcp.pop %v61
  %v63 = vmul.f32 1.0, %v62
  %v64 = vmul.f32 %v55, %v63
  %v65 = vadd.f32 %v52, %v64
  %66 = vst [vmem:[%s1] sm:$0xff] %v65
  // Predicated region
  $region6: #{_sample_pipeline.1} parent=0 // pred_check
    _
  $region7: #{_sample_pipeline.1} parent=0 // pred_check_branch
    %68 = sbr.rel (0) target = $region9
  $region8: #{_sample_pipeline.1} parent=0 // pred_region
    _
  $region9: #{_sample_pipeline.1} parent=0 // pred_fallthru
    _
  // Predicated region
  $region10: #{_sample_pipeline.1} parent=0 // pred_check
    _
  $region11: #{_sample_pipeline.1} parent=0 // pred_check_branch
    %70 = sbr.rel (0) target = $region13
  $region12: #{_sample_pipeline.1} parent=0 // pred_region
    _
  $region13: #{_sample_pipeline.1} parent=0 // pred_fallthru
    _

</llo_original>
